<compile_context>
chip_gen: v7x
topology: tpu7x:2x2x1
jax: 0.10.0
libtpu: 0.0.40
codegen_flags: <defaults>
</compile_context>

<pallas_src>
import jax
import jax.numpy as jnp
from jax.experimental import pallas as pl
from jax.experimental.pallas import tpu as pltpu


def ann_kernel(x_ref, w1_ref, b1_ref, w2_ref, b2_ref, w3_ref, b3_ref, o_ref):
    x = x_ref[...]                                                   # (bm, 12)

    # fc1 (+ folded BatchNorm1d(32) + bias) + ReLU
    h = jnp.dot(x, w1_ref[...], preferred_element_type=jnp.float32) + b1_ref[...]
    h = jnp.maximum(h, 0.0)                                          # (bm, 32)

    # drop1: Dropout(p=0.1) is identity in eval mode
    # TODO(synk): training-mode dropout (pltpu.prng_random_bits mask) not emitted.

    # fc2 (+ folded BatchNorm1d(8) + bias) + ReLU
    h = jnp.dot(h, w2_ref[...], preferred_element_type=jnp.float32) + b2_ref[...]
    h = jnp.maximum(h, 0.0)                                          # (bm, 8)

    # out (8 -> 2)
    y = jnp.dot(h, w3_ref[...], preferred_element_type=jnp.float32) + b3_ref[...]
    o_ref[...] = y.astype(o_ref.dtype)                               # (bm, 2)


def _round_up(n, m):
    return ((n + m - 1) // m) * m


def _fold_params(params):
    """Fold BN affine + linear bias into the linear weights (eval-mode exact)."""
    w1 = params["w1"] * params["s1"]                      # (12, 32)
    b1 = params["b1"] * params["s1"] + params["t1"]       # (1, 32)
    w2 = params["w2"] * params["s2"]                      # (32, 8)
    b2 = params["b2"] * params["s2"] + params["t2"]       # (1, 8)
    return w1, b1, w2, b2, params["w3"], params["b3"]


def ann_forward(x, params, *, block_m=None, force_pallas=False):
    """x: (B, 12) float32. params: dict with w1,b1,s1,t1,w2,b2,s2,t2,w3,b3.

    Returns (B, 2) float32 logits in the natural row-major layout (no wrapper
    transposes / pads — the kernel consumes and produces the natural layout).
    """
    B, Fin = x.shape
    w1, b1, w2, b2, w3, b3 = _fold_params(params)
    n_out = w3.shape[1]

    # Tiny-batch bypass: launch + pipeline overhead dominates a single padded
    # 128-lane step; plain XLA is faster and simpler at this size.
    if B < 128 and not force_pallas:
        h = jnp.maximum(x @ w1 + b1, 0.0)
        h = jnp.maximum(h @ w2 + b2, 0.0)
        return h @ w3 + b3

    if block_m is None:
        block_m = 4096
        # Keep at least 2 grid steps when the batch allows it so dual-core
        # parts (v7x megacore) shard the batch across both TensorCores.
        while block_m > 512 and pl.cdiv(B, block_m) < 2:
            block_m //= 2
        block_m = min(block_m, _round_up(B, 128))
    assert block_m % 8 == 0, "block_m must be a multiple of 8 (sublane width)"
    grid_m = pl.cdiv(B, block_m)  # ragged last block is masked by Pallas

    def repl(arr):
        # Full-extent parameter block with a constant index_map: fetched once.
        return pl.BlockSpec(arr.shape, lambda i: (0, 0))

    w_bytes = 4 * (w1.size + b1.size + w2.size + b2.size + w3.size + b3.size)
    cost = pl.CostEstimate(
        flops=2 * B * (12 * 32 + 32 * 8 + 8 * 2),
        transcendentals=0,
        # Weights have a constant index_map -> fetched once, not grid_m times.
        bytes_accessed=4 * B * (Fin + n_out) + w_bytes,
    )

    y = pl.pallas_call(
        ann_kernel,
        out_shape=jax.ShapeDtypeStruct((B, n_out), jnp.float32),
        grid_spec=pl.GridSpec(
            grid=(grid_m,),
            in_specs=[
                pl.BlockSpec((block_m, Fin), lambda i: (i, 0)),       # x tile
                repl(w1), repl(b1),
                repl(w2), repl(b2),
                repl(w3), repl(b3),
            ],
            out_specs=pl.BlockSpec((block_m, n_out), lambda i: (i, 0)),
        ),
        compiler_params=pltpu.CompilerParams(
            dimension_semantics=("parallel",),   # shard batch steps across TCs
            vmem_limit_bytes=32 * 1024 * 1024,   # lane-padded tiles @ bm=4096
        ),
        cost_estimate=cost,
    )(x, w1, b1, w2, b2, w3, b3)

    return y                                                       # (B, 2)


def make_params(key):
    """Deterministic parameter init mirroring the nn.Module shapes.
    Linear: W stored transposed as (in, out); bias as (1, out).
    BatchNorm1d folded: scale = gamma/sqrt(var+eps), shift = beta - mean*scale.
    """
    eps = 1e-5
    ks = jax.random.split(key, 16)
    p = {}

    def linear(kw, kb, fin, fout):
        bound = 1.0 / jnp.sqrt(fin)
        w = jax.random.uniform(kw, (fin, fout), jnp.float32, -bound, bound)
        b = jax.random.uniform(kb, (1, fout), jnp.float32, -bound, bound)
        return w, b

    def bn(kg, kb, km, kv, feat):
        gamma = 1.0 + 0.1 * jax.random.normal(kg, (1, feat), jnp.float32)
        beta = 0.1 * jax.random.normal(kb, (1, feat), jnp.float32)
        rmean = 0.1 * jax.random.normal(km, (1, feat), jnp.float32)
        rvar = jnp.abs(1.0 + 0.1 * jax.random.normal(kv, (1, feat), jnp.float32))
        scale = gamma / jnp.sqrt(rvar + eps)
        shift = beta - rmean * scale
        return scale, shift

    p["w1"], p["b1"] = linear(ks[0], ks[1], 12, 32)
    p["s1"], p["t1"] = bn(ks[2], ks[3], ks[4], ks[5], 32)
    p["w2"], p["b2"] = linear(ks[6], ks[7], 32, 8)
    p["s2"], p["t2"] = bn(ks[8], ks[9], ks[10], ks[11], 8)
    p["w3"], p["b3"] = linear(ks[12], ks[13], 8, 2)
    return p


def ann_reference(x, p):
    h = jnp.maximum((x @ p["w1"] + p["b1"]) * p["s1"] + p["t1"], 0.0)
    h = jnp.maximum((h @ p["w2"] + p["b2"]) * p["s2"] + p["t2"], 0.0)
    return h @ p["w3"] + p["b3"]


if __name__ == "__main__":
    key = jax.random.PRNGKey(0)
    kp, kx = jax.random.split(key)
    params = make_params(kp)

    # 1) Small lane-friendly batch through the Pallas kernel (single grid step).
    B = 256
    x = jax.random.normal(kx, (B, 12), jnp.float32)
    out = jax.block_until_ready(ann_forward(x, params, force_pallas=True))
    ref = ann_reference(x, params)
    assert out.shape == (B, 2)
    # BN/bias folding is algebraically exact; tolerance covers f32 rounding
    # order differences between the folded and unfolded formulations.
    assert jnp.allclose(out, ref, atol=1e-4, rtol=1e-4), "mismatch (B=256)"

    # 2) Ragged batch (tile does not divide B) through the kernel, 2 grid steps.
    B2 = 200
    x2 = jax.random.normal(jax.random.PRNGKey(1), (B2, 12), jnp.float32)
    out2 = jax.block_until_ready(
        ann_forward(x2, params, block_m=128, force_pallas=True))
    assert out2.shape == (B2, 2)
    assert jnp.allclose(out2, ann_reference(x2, params), atol=1e-4, rtol=1e-4), \
        "mismatch (ragged B=200)"

    # 3) Tiny batch takes the XLA bypass path.
    x3 = jax.random.normal(jax.random.PRNGKey(2), (8, 12), jnp.float32)
    out3 = jax.block_until_ready(ann_forward(x3, params))
    assert out3.shape == (8, 2)
    assert jnp.allclose(out3, ann_reference(x3, params), atol=1e-4, rtol=1e-4), \
        "mismatch (bypass B=8)"

    print("KERNEL_OK")
</pallas_src>

<mosaic_0001>
module attributes {stable_mosaic.version = 11 : i64} {
  func.func @ann_kernel(%arg0: i32, %arg1: memref<256x12xf32, #tpu.memory_space<vmem>>, %arg2: memref<12x32xf32, #tpu.memory_space<vmem>>, %arg3: memref<1x32xf32, #tpu.memory_space<vmem>>, %arg4: memref<32x8xf32, #tpu.memory_space<vmem>>, %arg5: memref<1x8xf32, #tpu.memory_space<vmem>>, %arg6: memref<8x2xf32, #tpu.memory_space<vmem>>, %arg7: memref<1x2xf32, #tpu.memory_space<vmem>>, %arg8: memref<256x2xf32, #tpu.memory_space<vmem>>) attributes {dimension_semantics = [#tpu.dimension_semantics<parallel>], iteration_bounds = array<i64: 1>, scalar_prefetch = 0 : i64, scratch_operands = 0 : i64, tpu.core_type = #tpu.core_type<tc>, window_params = [{transform_indices = @transform_0, window_bounds = array<i64: 256, 12>}, {pipeline_mode = #tpu.pipeline_mode<synchronous>, transform_indices = @transform_1, window_bounds = array<i64: 12, 32>}, {pipeline_mode = #tpu.pipeline_mode<synchronous>, transform_indices = @transform_2, window_bounds = array<i64: 1, 32>}, {pipeline_mode = #tpu.pipeline_mode<synchronous>, transform_indices = @transform_3, window_bounds = array<i64: 32, 8>}, {pipeline_mode = #tpu.pipeline_mode<synchronous>, transform_indices = @transform_4, window_bounds = array<i64: 1, 8>}, {pipeline_mode = #tpu.pipeline_mode<synchronous>, transform_indices = @transform_5, window_bounds = array<i64: 8, 2>}, {pipeline_mode = #tpu.pipeline_mode<synchronous>, transform_indices = @transform_6, window_bounds = array<i64: 1, 2>}, {transform_indices = @transform_7, window_bounds = array<i64: 256, 2>}]} {
    %c0 = arith.constant 0 : index
    %c0_0 = arith.constant 0 : index
    %0 = vector.load %arg1[%c0, %c0_0] : memref<256x12xf32, #tpu.memory_space<vmem>>, vector<256x12xf32>
    %c0_1 = arith.constant 0 : index
    %c0_2 = arith.constant 0 : index
    %1 = vector.load %arg2[%c0_1, %c0_2] : memref<12x32xf32, #tpu.memory_space<vmem>>, vector<12x32xf32>
    %cst = arith.constant dense<0.000000e+00> : vector<256x32xf32>
    %2 = tpu.matmul %0, %1, %cst {dimension_numbers = #tpu.dot_dimension_numbers<[1], [0], [0], [1], [0, 0, 1, 1], [], []>} : vector<256x12xf32>, vector<12x32xf32>, vector<256x32xf32> -> vector<256x32xf32>
    %c0_3 = arith.constant 0 : index
    %c0_4 = arith.constant 0 : index
    %3 = vector.load %arg3[%c0_3, %c0_4] : memref<1x32xf32, #tpu.memory_space<vmem>>, vector<1x32xf32>
    %4 = vector.broadcast %3 : vector<1x32xf32> to vector<256x32xf32>
    %5 = arith.addf %2, %4 : vector<256x32xf32>
    %cst_5 = arith.constant 0.000000e+00 : f32
    %6 = vector.broadcast %cst_5 : f32 to vector<256x32xf32>
    %7 = arith.maximumf %5, %6 : vector<256x32xf32>
    %c0_6 = arith.constant 0 : index
    %c0_7 = arith.constant 0 : index
    %8 = vector.load %arg4[%c0_6, %c0_7] : memref<32x8xf32, #tpu.memory_space<vmem>>, vector<32x8xf32>
    %cst_8 = arith.constant dense<0.000000e+00> : vector<256x8xf32>
    %9 = tpu.matmul %7, %8, %cst_8 {dimension_numbers = #tpu.dot_dimension_numbers<[1], [0], [0], [1], [0, 0, 1, 1], [], []>} : vector<256x32xf32>, vector<32x8xf32>, vector<256x8xf32> -> vector<256x8xf32>
    %c0_9 = arith.constant 0 : index
    %c0_10 = arith.constant 0 : index
    %10 = vector.load %arg5[%c0_9, %c0_10] : memref<1x8xf32, #tpu.memory_space<vmem>>, vector<1x8xf32>
    %11 = vector.broadcast %10 : vector<1x8xf32> to vector<256x8xf32>
    %12 = arith.addf %9, %11 : vector<256x8xf32>
    %cst_11 = arith.constant 0.000000e+00 : f32
    %13 = vector.broadcast %cst_11 : f32 to vector<256x8xf32>
    %14 = arith.maximumf %12, %13 : vector<256x8xf32>
    %c0_12 = arith.constant 0 : index
    %c0_13 = arith.constant 0 : index
    %15 = vector.load %arg6[%c0_12, %c0_13] : memref<8x2xf32, #tpu.memory_space<vmem>>, vector<8x2xf32>
    %cst_14 = arith.constant dense<0.000000e+00> : vector<256x2xf32>
    %16 = tpu.matmul %14, %15, %cst_14 {dimension_numbers = #tpu.dot_dimension_numbers<[1], [0], [0], [1], [0, 0, 1, 1], [], []>} : vector<256x8xf32>, vector<8x2xf32>, vector<256x2xf32> -> vector<256x2xf32>
    %c0_15 = arith.constant 0 : index
    %c0_16 = arith.constant 0 : index
    %17 = vector.load %arg7[%c0_15, %c0_16] : memref<1x2xf32, #tpu.memory_space<vmem>>, vector<1x2xf32>
    %18 = vector.broadcast %17 : vector<1x2xf32> to vector<256x2xf32>
    %19 = arith.addf %16, %18 : vector<256x2xf32>
    %c0_17 = arith.constant 0 : index
    %c0_18 = arith.constant 0 : index
    %20 = vector.load %arg8[%c0_17, %c0_18] : memref<256x2xf32, #tpu.memory_space<vmem>>, vector<256x2xf32>
    tpu.vector_store %arg8[%c0_17, %c0_18], %19 {strides = array<i32>} : memref<256x2xf32, #tpu.memory_space<vmem>>, vector<256x2xf32>,
    return
  }
  func.func @transform_0(%arg0: i32) -> (i32, i32) {
    %c0_i32 = arith.constant 0 : i32
    %c0_i32_0 = arith.constant 0 : i32
    return %arg0, %c0_i32 : i32, i32
  }
  func.func @transform_1(%arg0: i32) -> (i32, i32) {
    %c0_i32 = arith.constant 0 : i32
    %c0_i32_0 = arith.constant 0 : i32
    %c0_i32_1 = arith.constant 0 : i32
    return %c0_i32, %c0_i32_0 : i32, i32
  }
  func.func @transform_2(%arg0: i32) -> (i32, i32) {
    %c0_i32 = arith.constant 0 : i32
    %c0_i32_0 = arith.constant 0 : i32
    %c0_i32_1 = arith.constant 0 : i32
    return %c0_i32, %c0_i32_0 : i32, i32
  }
  func.func @transform_3(%arg0: i32) -> (i32, i32) {
    %c0_i32 = arith.constant 0 : i32
    %c0_i32_0 = arith.constant 0 : i32
    %c0_i32_1 = arith.constant 0 : i32
    return %c0_i32, %c0_i32_0 : i32, i32
  }
  func.func @transform_4(%arg0: i32) -> (i32, i32) {
    %c0_i32 = arith.constant 0 : i32
    %c0_i32_0 = arith.constant 0 : i32
    %c0_i32_1 = arith.constant 0 : i32
    return %c0_i32, %c0_i32_0 : i32, i32
  }
  func.func @transform_5(%arg0: i32) -> (i32, i32) {
    %c0_i32 = arith.constant 0 : i32
    %c0_i32_0 = arith.constant 0 : i32
    %c0_i32_1 = arith.constant 0 : i32
    return %c0_i32, %c0_i32_0 : i32, i32
  }
  func.func @transform_6(%arg0: i32) -> (i32, i32) {
    %c0_i32 = arith.constant 0 : i32
    %c0_i32_0 = arith.constant 0 : i32
    %c0_i32_1 = arith.constant 0 : i32
    return %c0_i32, %c0_i32_0 : i32, i32
  }
  func.func @transform_7(%arg0: i32) -> (i32, i32) {
    %c0_i32 = arith.constant 0 : i32
    %c0_i32_0 = arith.constant 0 : i32
    return %arg0, %c0_i32 : i32, i32
  }
}

</mosaic_0001>

<llo_original>
// kernel: tpu_custom_call.1
$region0: #{tpu_custom_call.1}
  #allocation0 [shape = 'u32[]', space=smem, size = 0x4, offset = 0x4, fixed_abs, tag = 'smem constant byte address 0x4 - core index']
  #allocation1 [shape = 'u32[144,128]{1,0:T(1,128)}', space=vmem, size = 0x12000, scoped, tag = 'internal scratch']
  %s0 = inlined_call_operand.vmem [shape: f32[256,12], index: 0, kind: input, shape index: {}]
  %s1 = inlined_call_operand.vmem [shape: f32[12,32], index: 1, kind: input, shape index: {}]
  %s2 = inlined_call_operand.vmem [shape: f32[1,32], index: 2, kind: input, shape index: {}]
  %s3 = inlined_call_operand.vmem [shape: f32[32,8], index: 3, kind: input, shape index: {}]
  %s4 = inlined_call_operand.vmem [shape: f32[1,8], index: 4, kind: input, shape index: {}]
  %s5 = inlined_call_operand.vmem [shape: f32[8,2], index: 5, kind: input, shape index: {}]
  %s6 = inlined_call_operand.vmem [shape: f32[1,2], index: 6, kind: input, shape index: {}]
  %s7 = inlined_call_operand.vmem [shape: f32[256,2], index: 7, kind: output, shape index: {}]
  %s8 = sld [smem:[#allocation0]]
  $region38: #{tpu_custom_call.1} parent=0
    _
  %s10 = ssub.s32 1, %s8
  %s11 = scalar_select 0, %s10, %s8
  // Predicated region
  $region2: #{tpu_custom_call.1} parent=0 // pred_check
    _
  $region3: #{tpu_custom_call.1} parent=0 // pred_check_branch
    %13 = sbr.rel (0) target = $region5
  $region4: #{tpu_custom_call.1} parent=0 // pred_region
    _
  $region5: #{tpu_custom_call.1} parent=0 // pred_fallthru
    _
  // Predicated region
  $region6: #{tpu_custom_call.1} parent=0 // pred_check
    _
  $region7: #{tpu_custom_call.1} parent=0 // pred_check_branch
    %15 = sbr.rel (0) target = $region9
  $region8: #{tpu_custom_call.1} parent=0 // pred_region
    _
  $region9: #{tpu_custom_call.1} parent=0 // pred_fallthru
    _
  // Predicated region
  $region10: #{tpu_custom_call.1} parent=0 // pred_check
    _
  $region11: #{tpu_custom_call.1} parent=0 // pred_check_branch
    %17 = sbr.rel (0) target = $region13
  $region12: #{tpu_custom_call.1} parent=0 // pred_region
    _
  $region13: #{tpu_custom_call.1} parent=0 // pred_fallthru
    _
  // Predicated region
  $region14: #{tpu_custom_call.1} parent=0 // pred_check
    _
  $region15: #{tpu_custom_call.1} parent=0 // pred_check_branch
    %19 = sbr.rel (0) target = $region17
  $region16: #{tpu_custom_call.1} parent=0 // pred_region
    _
  $region17: #{tpu_custom_call.1} parent=0 // pred_fallthru
    _
  // Predicated region
  $region18: #{tpu_custom_call.1} parent=0 // pred_check
    _
  $region19: #{tpu_custom_call.1} parent=0 // pred_check_branch
    %21 = sbr.rel (0) target = $region21
  $region20: #{tpu_custom_call.1} parent=0 // pred_region
    _
  $region21: #{tpu_custom_call.1} parent=0 // pred_fallthru
    _
  // Predicated region
  $region22: #{tpu_custom_call.1} parent=0 // pred_check
    _
  $region23: #{tpu_custom_call.1} parent=0 // pred_check_branch
    %23 = sbr.rel (0) target = $region25
  $region24: #{tpu_custom_call.1} parent=0 // pred_region
    _
  $region25: #{tpu_custom_call.1} parent=0 // pred_fallthru
    _
  // Predicated region
  $region26: #{tpu_custom_call.1} parent=0 // pred_check
    _
  $region27: #{tpu_custom_call.1} parent=0 // pred_check_branch
    %25 = sbr.rel (0) target = $region29
  $region28: #{tpu_custom_call.1} parent=0 // pred_region
    _
  $region29: #{tpu_custom_call.1} parent=0 // pred_fallthru
    _
  %v26 = vld [vmem:[%s0] sm:$0xff]
  %v27 = vld [vmem:[%s0 + $0x8] sm:$0xff]
  %v28 = vld [vmem:[%s0 + $0x10] sm:$0xff]
  %v29 = vld [vmem:[%s0 + $0x18] sm:$0xff]
  %v30 = vld [vmem:[%s0 + $0x20] sm:$0xff]
  %v31 = vld [vmem:[%s0 + $0x28] sm:$0xff]
  %v32 = vld [vmem:[%s0 + $0x30] sm:$0xff]
  %v33 = vld [vmem:[%s0 + $0x38] sm:$0xff]
  %v34 = vld [vmem:[%s0 + $0x40] sm:$0xff]
  %v35 = vld [vmem:[%s0 + $0x48] sm:$0xff]
  %v36 = vld [vmem:[%s0 + $0x50] sm:$0xff]
  %v37 = vld [vmem:[%s0 + $0x58] sm:$0xff]
  %v38 = vld [vmem:[%s0 + $0x60] sm:$0xff]
  %v39 = vld [vmem:[%s0 + $0x68] sm:$0xff]
  %v40 = vld [vmem:[%s0 + $0x70] sm:$0xff]
  %v41 = vld [vmem:[%s0 + $0x78] sm:$0xff]
  %v42 = vld [vmem:[%s0 + $0x80] sm:$0xff]
  %v43 = vld [vmem:[%s0 + $0x88] sm:$0xff]
  %v44 = vld [vmem:[%s0 + $0x90] sm:$0xff]
  %v45 = vld [vmem:[%s0 + $0x98] sm:$0xff]
  %v46 = vld [vmem:[%s0 + $0xa0] sm:$0xff]
  %v47 = vld [vmem:[%s0 + $0xa8] sm:$0xff]
  %v48 = vld [vmem:[%s0 + $0xb0] sm:$0xff]
  %v49 = vld [vmem:[%s0 + $0xb8] sm:$0xff]
  %v50 = vld [vmem:[%s0 + $0xc0] sm:$0xff]
  %v51 = vld [vmem:[%s0 + $0xc8] sm:$0xff]
  %v52 = vld [vmem:[%s0 + $0xd0] sm:$0xff]
  %v53 = vld [vmem:[%s0 + $0xd8] sm:$0xff]
  %v54 = vld [vmem:[%s0 + $0xe0] sm:$0xff]
  %v55 = vld [vmem:[%s0 + $0xe8] sm:$0xff]
  %v56 = vld [vmem:[%s0 + $0xf0] sm:$0xff]
  %v57 = vld [vmem:[%s0 + $0xf8] sm:$0xff]
  %v58 = vld [vmem:[%s1] sm:$0xff]
  %v59 = vld [vmem:[%s1 + $0x8] sm:$0xf]
  %v60 = vld [vmem:[%s2] sm:$0x1]
  %v62 = vlaneseq
  %v63 = vshrl.u32 %v62, 7
  %v64 = vsub.s32 0, %v63
  %v65 = vrot.slane %v60, %v64
  %vm67 = vcmask 97280
  %v69 = vsel %vm67, %v26, 0
  %v72 = vsel %vm67, %v27, 0
  %v75 = vsel %vm67, %v28, 0
  %v78 = vsel %vm67, %v29, 0
  %v81 = vsel %vm67, %v30, 0
  %v84 = vsel %vm67, %v31, 0
  %v87 = vsel %vm67, %v32, 0
  %v90 = vsel %vm67, %v33, 0
  %v93 = vsel %vm67, %v34, 0
  %v96 = vsel %vm67, %v35, 0
  %v99 = vsel %vm67, %v36, 0
  %v102 = vsel %vm67, %v37, 0
  %v105 = vsel %vm67, %v38, 0
  %v108 = vsel %vm67, %v39, 0
  %v111 = vsel %vm67, %v40, 0
  %v114 = vsel %vm67, %v41, 0
  %v117 = vsel %vm67, %v42, 0
  %v120 = vsel %vm67, %v43, 0
  %v123 = vsel %vm67, %v44, 0
  %v126 = vsel %vm67, %v45, 0
  %v129 = vsel %vm67, %v46, 0
  %v132 = vsel %vm67, %v47, 0
  %v135 = vsel %vm67, %v48, 0
  %v138 = vsel %vm67, %v49, 0
  %v141 = vsel %vm67, %v50, 0
  %v144 = vsel %vm67, %v51, 0
  %v147 = vsel %vm67, %v52, 0
  %v150 = vsel %vm67, %v53, 0
  %v153 = vsel %vm67, %v54, 0
  %v156 = vsel %vm67, %v55, 0
  %v159 = vsel %vm67, %v56, 0
  %v162 = vsel %vm67, %v57, 0
  %vm164 = vcmask 1043456
  %v166 = vsel %vm164, %v59, 0
  %168 = vmatprep.subr.mxu0 0.0
  %169 = vmatpush1.msra.mxu0 %v58
  %170 = vmatprep.subr.mxu0 0.0
  %171 = vmatpush1.msra.mxu0 %v166
  %172 = vmatprep.subr.mxu0 0.0
  %173 = vmatpush1.msra.mxu0 0.0
  %174 = vmatprep.subr.mxu0 0.0
  %175 = vmatpush1.msra.mxu0 0.0
  %176 = vmatprep.subr.mxu0 0.0
  %177 = vmatpush1.msra.mxu0 0.0
  %178 = vmatprep.subr.mxu0 0.0
  %179 = vmatpush1.msra.mxu0 0.0
  %180 = vmatprep.subr.mxu0 0.0
  %181 = vmatpush1.msra.mxu0 0.0
  %182 = vmatprep.subr.mxu0 0.0
  %183 = vmatpush1.msra.mxu0 0.0
  %184 = vmatprep.subr.mxu0 0.0
  %185 = vmatpush1.msra.mxu0 0.0
  %186 = vmatprep.subr.mxu0 0.0
  %187 = vmatpush1.msra.mxu0 0.0
  %188 = vmatprep.subr.mxu0 0.0
  %189 = vmatpush1.msra.mxu0 0.0
  %190 = vmatprep.subr.mxu0 0.0
  %191 = vmatpush1.msra.mxu0 0.0
  %192 = vmatprep.subr.mxu0 0.0
  %193 = vmatpush1.msra.mxu0 0.0
  %194 = vmatprep.subr.mxu0 0.0
  %195 = vmatpush1.msra.mxu0 0.0
  %196 = vmatprep.subr.mxu0 0.0
  %197 = vmatpush1.msra.mxu0 0.0
  %198 = vmatprep.subr.mxu0 0.0
  %199 = vmatpush1.msra.mxu0 0.0
  %200 = vmatprep.subr.mxu0 0.0
  %201 = vmatpush1.msra.mxu0 0.0
  %202 = vmatprep.subr.mxu0 0.0
  %203 = vmatpush1.msra.mxu0 0.0
  %204 = vmatprep.subr.mxu0 0.0
  %205 = vmatpush1.msra.mxu0 0.0
  %206 = vmatprep.subr.mxu0 0.0
  %207 = vmatpush1.msra.mxu0 0.0
  %208 = vmatprep.subr.mxu0 0.0
  %209 = vmatpush1.msra.mxu0 0.0
  %210 = vmatprep.subr.mxu0 0.0
  %211 = vmatpush1.msra.mxu0 0.0
  %212 = vmatprep.subr.mxu0 0.0
  %213 = vmatpush1.msra.mxu0 0.0
  %214 = vmatprep.subr.mxu0 0.0
  %215 = vmatpush1.msra.mxu0 0.0
  %216 = vmatprep.subr.mxu0 0.0
  %217 = vmatpush1.msra.mxu0 0.0
  %218 = vmatprep.subr.mxu0 0.0
  %219 = vmatpush1.msra.mxu0 0.0
  %220 = vmatprep.subr.mxu0 0.0
  %221 = vmatpush1.msra.mxu0 0.0
  %222 = vmatprep.subr.mxu0 0.0
  %223 = vmatpush1.msra.mxu0 0.0
  %224 = vmatprep.subr.mxu0 0.0
  %225 = vmatpush1.msra.mxu0 0.0
  %226 = vmatprep.subr.mxu0 0.0
  %227 = vmatpush1.msra.mxu0 0.0
  %228 = vmatprep.subr.mxu0 0.0
  %229 = vmatpush1.msra.mxu0 0.0
  %230 = vmatprep.subr.mxu0 0.0
  %231 = vmatpush1.msra.mxu0 0.0
  %232 = vmatprep.mubr.f32.mxu0 0.0
  %233 = vmatmul.mubr.f32.gmra.mrb[0].mxu0 %v69
  %v234 = vpop.f32.mrb[0].mxu0
  %v235 = vadd.f32 %v65, %v234
  %v236 = vpop.f32.mrb[0].mxu0
  %237 = vmatprep.mubr.f32.mxu0 0.0
  %238 = vmatmul.mubr.f32.gmra.mrb[0].mxu0 %v72
  %v239 = vpop.f32.mrb[0].mxu0
  %v240 = vadd.f32 %v65, %v239
  %v241 = vpop.f32.mrb[0].mxu0
  %242 = vmatprep.mubr.f32.mxu0 0.0
  %243 = vmatmul.mubr.f32.gmra.mrb[0].mxu0 %v75
  %v244 = vpop.f32.mrb[0].mxu0
  %v245 = vadd.f32 %v65, %v244
  %v246 = vpop.f32.mrb[0].mxu0
  %247 = vmatprep.mubr.f32.mxu0 0.0
  %248 = vmatmul.mubr.f32.gmra.mrb[0].mxu0 %v78
  %v249 = vpop.f32.mrb[0].mxu0
  %v250 = vadd.f32 %v65, %v249
  %v251 = vpop.f32.mrb[0].mxu0
  %252 = vmatprep.mubr.f32.mxu0 0.0
  %253 = vmatmul.mubr.f32.gmra.mrb[0].mxu0 %v81
  %v254 = vpop.f32.mrb[0].mxu0
  %v255 = vadd.f32 %v65, %v254
  %v256 = vpop.f32.mrb[0].mxu0
  %257 = vmatprep.mubr.f32.mxu0 0.0
  %258 = vmatmul.mubr.f32.gmra.mrb[0].mxu0 %v84
  %v259 = vpop.f32.mrb[0].mxu0
  %v260 = vadd.f32 %v65, %v259
  %v261 = vpop.f32.mrb[0].mxu0
  %262 = vmatprep.mubr.f32.mxu0 0.0
  %263 = vmatmul.mubr.f32.gmra.mrb[0].mxu0 %v87
  %v264 = vpop.f32.mrb[0].mxu0
  %v265 = vadd.f32 %v65, %v264
  %v266 = vpop.f32.mrb[0].mxu0
  %267 = vmatprep.mubr.f32.mxu0 0.0
  %268 = vmatmul.mubr.f32.gmra.mrb[0].mxu0 %v90
  %v269 = vpop.f32.mrb[0].mxu0
  %v270 = vadd.f32 %v65, %v269
  %v271 = vpop.f32.mrb[0].mxu0
  %272 = vmatprep.mubr.f32.mxu0 0.0
  %273 = vmatmul.mubr.f32.gmra.mrb[0].mxu0 %v93
  %v274 = vpop.f32.mrb[0].mxu0
  %v275 = vadd.f32 %v65, %v274
  %v276 = vpop.f32.mrb[0].mxu0
  %277 = vmatprep.mubr.f32.mxu0 0.0
  %278 = vmatmul.mubr.f32.gmra.mrb[0].mxu0 %v96
  %v279 = vpop.f32.mrb[0].mxu0
  %v280 = vadd.f32 %v65, %v279
  %v281 = vpop.f32.mrb[0].mxu0
  %282 = vmatprep.mubr.f32.mxu0 0.0
  %283 = vmatmul.mubr.f32.gmra.mrb[0].mxu0 %v99
  %v284 = vpop.f32.mrb[0].mxu0
  %v285 = vadd.f32 %v65, %v284
  %v286 = vpop.f32.mrb[0].mxu0
  %287 = vmatprep.mubr.f32.mxu0 0.0
  %288 = vmatmul.mubr.f32.gmra.mrb[0].mxu0 %v102
  %v289 = vpop.f32.mrb[0].mxu0
  %v290 = vadd.f32 %v65, %v289
  %v291 = vpop.f32.mrb[0].mxu0
  %292 = vmatprep.mubr.f32.mxu0 0.0
  %293 = vmatmul.mubr.f32.gmra.mrb[0].mxu0 %v105
  %v294 = vpop.f32.mrb[0].mxu0
  %v295 = vadd.f32 %v65, %v294
  %v296 = vpop.f32.mrb[0].mxu0
  %297 = vmatprep.mubr.f32.mxu0 0.0
  %298 = vmatmul.mubr.f32.gmra.mrb[0].mxu0 %v108
  %v299 = vpop.f32.mrb[0].mxu0
  %v300 = vadd.f32 %v65, %v299
  %v301 = vpop.f32.mrb[0].mxu0
  %302 = vmatprep.mubr.f32.mxu0 0.0
  %303 = vmatmul.mubr.f32.gmra.mrb[0].mxu0 %v111
  %v304 = vpop.f32.mrb[0].mxu0
  %v305 = vadd.f32 %v65, %v304
  %v306 = vpop.f32.mrb[0].mxu0
  %307 = vmatprep.mubr.f32.mxu0 0.0
  %308 = vmatmul.mubr.f32.gmra.mrb[0].mxu0 %v114
  %v309 = vpop.f32.mrb[0].mxu0
  %v310 = vadd.f32 %v65, %v309
  %v311 = vpop.f32.mrb[0].mxu0
  %312 = vmatprep.mubr.f32.mxu0 0.0
  %313 = vmatmul.mubr.f32.gmra.mrb[0].mxu0 %v117
  %v314 = vpop.f32.mrb[0].mxu0
  %v315 = vadd.f32 %v65, %v314
  %v316 = vpop.f32.mrb[0].mxu0
  %317 = vmatprep.mubr.f32.mxu0 0.0
  %318 = vmatmul.mubr.f32.gmra.mrb[0].mxu0 %v120
  %v319 = vpop.f32.mrb[0].mxu0
  %v320 = vadd.f32 %v65, %v319
  %v321 = vpop.f32.mrb[0].mxu0
  %322 = vmatprep.mubr.f32.mxu0 0.0
  %323 = vmatmul.mubr.f32.gmra.mrb[0].mxu0 %v123
  %v324 = vpop.f32.mrb[0].mxu0
  %v325 = vadd.f32 %v65, %v324
  %v326 = vpop.f32.mrb[0].mxu0
  %327 = vmatprep.mubr.f32.mxu0 0.0
  %328 = vmatmul.mubr.f32.gmra.mrb[0].mxu0 %v126
  %v329 = vpop.f32.mrb[0].mxu0
  %v330 = vadd.f32 %v65, %v329
  %v331 = vpop.f32.mrb[0].mxu0
  %332 = vmatprep.mubr.f32.mxu0 0.0
  %333 = vmatmul.mubr.f32.gmra.mrb[0].mxu0 %v129
  %v334 = vpop.f32.mrb[0].mxu0
  %v335 = vadd.f32 %v65, %v334
  %v336 = vpop.f32.mrb[0].mxu0
  %337 = vmatprep.mubr.f32.mxu0 0.0
  %338 = vmatmul.mubr.f32.gmra.mrb[0].mxu0 %v132
  %v339 = vpop.f32.mrb[0].mxu0
  %v340 = vadd.f32 %v65, %v339
  %v341 = vpop.f32.mrb[0].mxu0
  %342 = vmatprep.mubr.f32.mxu0 0.0
  %343 = vmatmul.mubr.f32.gmra.mrb[0].mxu0 %v135
  %v344 = vpop.f32.mrb[0].mxu0
  %v345 = vadd.f32 %v65, %v344
  %v346 = vpop.f32.mrb[0].mxu0
  %347 = vmatprep.mubr.f32.mxu0 0.0
  %348 = vmatmul.mubr.f32.gmra.mrb[0].mxu0 %v138
  %v349 = vpop.f32.mrb[0].mxu0
  %v350 = vadd.f32 %v65, %v349
  %v351 = vpop.f32.mrb[0].mxu0
  %352 = vmatprep.mubr.f32.mxu0 0.0
  %353 = vmatmul.mubr.f32.gmra.mrb[0].mxu0 %v141
  %v354 = vpop.f32.mrb[0].mxu0
  %v355 = vadd.f32 %v65, %v354
  %v356 = vpop.f32.mrb[0].mxu0
  %357 = vmatprep.mubr.f32.mxu0 0.0
  %358 = vmatmul.mubr.f32.gmra.mrb[0].mxu0 %v144
  %v359 = vpop.f32.mrb[0].mxu0
  %v360 = vadd.f32 %v65, %v359
  %v361 = vpop.f32.mrb[0].mxu0
  %362 = vmatprep.mubr.f32.mxu0 0.0
  %363 = vmatmul.mubr.f32.gmra.mrb[0].mxu0 %v147
  %v364 = vpop.f32.mrb[0].mxu0
  %v365 = vadd.f32 %v65, %v364
  %v366 = vpop.f32.mrb[0].mxu0
  %367 = vmatprep.mubr.f32.mxu0 0.0
  %368 = vmatmul.mubr.f32.gmra.mrb[0].mxu0 %v150
  %v369 = vpop.f32.mrb[0].mxu0
  %v370 = vadd.f32 %v65, %v369
  %v371 = vpop.f32.mrb[0].mxu0
  %372 = vmatprep.mubr.f32.mxu0 0.0
  %373 = vmatmul.mubr.f32.gmra.mrb[0].mxu0 %v153
  %v374 = vpop.f32.mrb[0].mxu0
  %v375 = vadd.f32 %v65, %v374
  %v376 = vpop.f32.mrb[0].mxu0
  %377 = vmatprep.mubr.f32.mxu0 0.0
  %378 = vmatmul.mubr.f32.gmra.mrb[0].mxu0 %v156
  %v379 = vpop.f32.mrb[0].mxu0
  %v380 = vadd.f32 %v65, %v379
  %v381 = vpop.f32.mrb[0].mxu0
  %382 = vmatprep.mubr.f32.mxu0 0.0
  %383 = vmatmul.mubr.f32.gmra.mrb[0].mxu0 %v159
  %v384 = vpop.f32.mrb[0].mxu0
  %v385 = vadd.f32 %v65, %v384
  %v386 = vpop.f32.mrb[0].mxu0
  %387 = vmatprep.mubr.f32.mxu0 0.0
  %388 = vmatmul.mubr.f32.gmra.mrb[0].mxu0 %v162
  %v389 = vpop.f32.mrb[0].mxu0
  %v390 = vadd.f32 %v65, %v389
  %v391 = vpop.f32.mrb[0].mxu0
  %392 = vdwg.mxu0
  %v393 = vmax.f32 %v235, 0.0
  %v394 = vmax.f32 %v240, 0.0
  %v395 = vmax.f32 %v245, 0.0
  %v396 = vmax.f32 %v250, 0.0
  %v397 = vmax.f32 %v255, 0.0
  %v398 = vmax.f32 %v260, 0.0
  %v399 = vmax.f32 %v265, 0.0
  %v400 = vmax.f32 %v270, 0.0
  %v401 = vmax.f32 %v275, 0.0
  %v402 = vmax.f32 %v280, 0.0
  %v403 = vmax.f32 %v285, 0.0
  %v404 = vmax.f32 %v290, 0.0
  %v405 = vmax.f32 %v295, 0.0
  %v406 = vmax.f32 %v300, 0.0
  %v407 = vmax.f32 %v305, 0.0
  %v408 = vmax.f32 %v310, 0.0
  %v409 = vmax.f32 %v315, 0.0
  %v410 = vmax.f32 %v320, 0.0
  %v411 = vmax.f32 %v325, 0.0
  %v412 = vmax.f32 %v330, 0.0
  %v413 = vmax.f32 %v335, 0.0
  %v414 = vmax.f32 %v340, 0.0
  %v415 = vmax.f32 %v345, 0.0
  %v416 = vmax.f32 %v350, 0.0
  %v417 = vmax.f32 %v355, 0.0
  %v418 = vmax.f32 %v360, 0.0
  %v419 = vmax.f32 %v365, 0.0
  %v420 = vmax.f32 %v370, 0.0
  %v421 = vmax.f32 %v375, 0.0
  %v422 = vmax.f32 %v380, 0.0
  %v423 = vmax.f32 %v385, 0.0
  %v424 = vmax.f32 %v390, 0.0
  %v425 = vld [vmem:[%s3] sm:$0xff]
  %v426 = vld [vmem:[%s3 + $0x8] sm:$0xff]
  %v427 = vld [vmem:[%s3 + $0x10] sm:$0xff]
  %v428 = vld [vmem:[%s3 + $0x18] sm:$0xff]
  %v429 = vld [vmem:[%s4] sm:$0x1]
  %v431 = vlaneseq
  %v432 = vshrl.u32 %v431, 7
  %v433 = vsub.s32 0, %v432
  %v434 = vrot.slane %v429, %v433
  %vm436 = vcmask 261120
  %v438 = vsel %vm436, %v393, 0
  %v441 = vsel %vm436, %v394, 0
  %v444 = vsel %vm436, %v395, 0
  %v447 = vsel %vm436, %v396, 0
  %v450 = vsel %vm436, %v397, 0
  %v453 = vsel %vm436, %v398, 0
  %v456 = vsel %vm436, %v399, 0
  %v459 = vsel %vm436, %v400, 0
  %v462 = vsel %vm436, %v401, 0
  %v465 = vsel %vm436, %v402, 0
  %v468 = vsel %vm436, %v403, 0
  %v471 = vsel %vm436, %v404, 0
  %v474 = vsel %vm436, %v405, 0
  %v477 = vsel %vm436, %v406, 0
  %v480 = vsel %vm436, %v407, 0
  %v483 = vsel %vm436, %v408, 0
  %v486 = vsel %vm436, %v409, 0
  %v489 = vsel %vm436, %v410, 0
  %v492 = vsel %vm436, %v411, 0
  %v495 = vsel %vm436, %v412, 0
  %v498 = vsel %vm436, %v413, 0
  %v501 = vsel %vm436, %v414, 0
  %v504 = vsel %vm436, %v415, 0
  %v507 = vsel %vm436, %v416, 0
  %v510 = vsel %vm436, %v417, 0
  %v513 = vsel %vm436, %v418, 0
  %v516 = vsel %vm436, %v419, 0
  %v519 = vsel %vm436, %v420, 0
  %v522 = vsel %vm436, %v421, 0
  %v525 = vsel %vm436, %v422, 0
  %v528 = vsel %vm436, %v423, 0
  %v531 = vsel %vm436, %v424, 0
  %533 = vmatprep.subr.mxu0 0.0
  %534 = vmatpush1.msra.mxu0 %v425
  %535 = vmatprep.subr.mxu0 0.0
  %536 = vmatpush1.msra.mxu0 %v426
  %537 = vmatprep.subr.mxu0 0.0
  %538 = vmatpush1.msra.mxu0 %v427
  %539 = vmatprep.subr.mxu0 0.0
  %540 = vmatpush1.msra.mxu0 %v428
  %541 = vmatprep.subr.mxu0 0.0
  %542 = vmatpush1.msra.mxu0 0.0
  %543 = vmatprep.subr.mxu0 0.0
  %544 = vmatpush1.msra.mxu0 0.0
  %545 = vmatprep.subr.mxu0 0.0
  %546 = vmatpush1.msra.mxu0 0.0
  %547 = vmatprep.subr.mxu0 0.0
  %548 = vmatpush1.msra.mxu0 0.0
  %549 = vmatprep.subr.mxu0 0.0
  %550 = vmatpush1.msra.mxu0 0.0
  %551 = vmatprep.subr.mxu0 0.0
  %552 = vmatpush1.msra.mxu0 0.0
  %553 = vmatprep.subr.mxu0 0.0
  %554 = vmatpush1.msra.mxu0 0.0
  %555 = vmatprep.subr.mxu0 0.0
  %556 = vmatpush1.msra.mxu0 0.0
  %557 = vmatprep.subr.mxu0 0.0
  %558 = vmatpush1.msra.mxu0 0.0
  %559 = vmatprep.subr.mxu0 0.0
  %560 = vmatpush1.msra.mxu0 0.0
  %561 = vmatprep.subr.mxu0 0.0
  %562 = vmatpush1.msra.mxu0 0.0
  %563 = vmatprep.subr.mxu0 0.0
  %564 = vmatpush1.msra.mxu0 0.0
  %565 = vmatprep.subr.mxu0 0.0
  %566 = vmatpush1.msra.mxu0 0.0
  %567 = vmatprep.subr.mxu0 0.0
  %568 = vmatpush1.msra.mxu0 0.0
  %569 = vmatprep.subr.mxu0 0.0
  %570 = vmatpush1.msra.mxu0 0.0
  %571 = vmatprep.subr.mxu0 0.0
  %572 = vmatpush1.msra.mxu0 0.0
  %573 = vmatprep.subr.mxu0 0.0
  %574 = vmatpush1.msra.mxu0 0.0
  %575 = vmatprep.subr.mxu0 0.0
  %576 = vmatpush1.msra.mxu0 0.0
  %577 = vmatprep.subr.mxu0 0.0
  %578 = vmatpush1.msra.mxu0 0.0
  %579 = vmatprep.subr.mxu0 0.0
  %580 = vmatpush1.msra.mxu0 0.0
  %581 = vmatprep.subr.mxu0 0.0
  %582 = vmatpush1.msra.mxu0 0.0
  %583 = vmatprep.subr.mxu0 0.0
  %584 = vmatpush1.msra.mxu0 0.0
  %585 = vmatprep.subr.mxu0 0.0
  %586 = vmatpush1.msra.mxu0 0.0
  %587 = vmatprep.subr.mxu0 0.0
  %588 = vmatpush1.msra.mxu0 0.0
  %589 = vmatprep.subr.mxu0 0.0
  %590 = vmatpush1.msra.mxu0 0.0
  %591 = vmatprep.subr.mxu0 0.0
  %592 = vmatpush1.msra.mxu0 0.0
  %593 = vmatprep.subr.mxu0 0.0
  %594 = vmatpush1.msra.mxu0 0.0
  %595 = vmatprep.subr.mxu0 0.0
  %596 = vmatpush1.msra.mxu0 0.0
  %597 = vmatprep.mubr.f32.mxu0 0.0
  %598 = vmatmul.mubr.f32.gmra.mrb[0].mxu0 %v438
  %v599 = vpop.f32.mrb[0].mxu0
  %v600 = vadd.f32 %v434, %v599
  %v601 = vpop.f32.mrb[0].mxu0
  %602 = vmatprep.mubr.f32.mxu0 0.0
  %603 = vmatmul.mubr.f32.gmra.mrb[0].mxu0 %v441
  %v604 = vpop.f32.mrb[0].mxu0
  %v605 = vadd.f32 %v434, %v604
  %v606 = vpop.f32.mrb[0].mxu0
  %607 = vmatprep.mubr.f32.mxu0 0.0
  %608 = vmatmul.mubr.f32.gmra.mrb[0].mxu0 %v444
  %v609 = vpop.f32.mrb[0].mxu0
  %v610 = vadd.f32 %v434, %v609
  %v611 = vpop.f32.mrb[0].mxu0
  %612 = vmatprep.mubr.f32.mxu0 0.0
  %613 = vmatmul.mubr.f32.gmra.mrb[0].mxu0 %v447
  %v614 = vpop.f32.mrb[0].mxu0
  %v615 = vadd.f32 %v434, %v614
  %v616 = vpop.f32.mrb[0].mxu0
  %617 = vmatprep.mubr.f32.mxu0 0.0
  %618 = vmatmul.mubr.f32.gmra.mrb[0].mxu0 %v450
  %v619 = vpop.f32.mrb[0].mxu0
  %v620 = vadd.f32 %v434, %v619
  %v621 = vpop.f32.mrb[0].mxu0
  %622 = vmatprep.mubr.f32.mxu0 0.0
  %623 = vmatmul.mubr.f32.gmra.mrb[0].mxu0 %v453
  %v624 = vpop.f32.mrb[0].mxu0
  %v625 = vadd.f32 %v434, %v624
  %v626 = vpop.f32.mrb[0].mxu0
  %627 = vmatprep.mubr.f32.mxu0 0.0
  %628 = vmatmul.mubr.f32.gmra.mrb[0].mxu0 %v456
  %v629 = vpop.f32.mrb[0].mxu0
  %v630 = vadd.f32 %v434, %v629
  %v631 = vpop.f32.mrb[0].mxu0
  %632 = vmatprep.mubr.f32.mxu0 0.0
  %633 = vmatmul.mubr.f32.gmra.mrb[0].mxu0 %v459
  %v634 = vpop.f32.mrb[0].mxu0
  %v635 = vadd.f32 %v434, %v634
  %v636 = vpop.f32.mrb[0].mxu0
  %637 = vmatprep.mubr.f32.mxu0 0.0
  %638 = vmatmul.mubr.f32.gmra.mrb[0].mxu0 %v462
  %v639 = vpop.f32.mrb[0].mxu0
  %v640 = vadd.f32 %v434, %v639
  %v641 = vpop.f32.mrb[0].mxu0
  %642 = vmatprep.mubr.f32.mxu0 0.0
  %643 = vmatmul.mubr.f32.gmra.mrb[0].mxu0 %v465
  %v644 = vpop.f32.mrb[0].mxu0
  %v645 = vadd.f32 %v434, %v644
  %v646 = vpop.f32.mrb[0].mxu0
  %647 = vmatprep.mubr.f32.mxu0 0.0
  %648 = vmatmul.mubr.f32.gmra.mrb[0].mxu0 %v468
  %v649 = vpop.f32.mrb[0].mxu0
  %v650 = vadd.f32 %v434, %v649
  %v651 = vpop.f32.mrb[0].mxu0
  %652 = vmatprep.mubr.f32.mxu0 0.0
  %653 = vmatmul.mubr.f32.gmra.mrb[0].mxu0 %v471
  %v654 = vpop.f32.mrb[0].mxu0
  %v655 = vadd.f32 %v434, %v654
  %v656 = vpop.f32.mrb[0].mxu0
  %657 = vmatprep.mubr.f32.mxu0 0.0
  %658 = vmatmul.mubr.f32.gmra.mrb[0].mxu0 %v474
  %v659 = vpop.f32.mrb[0].mxu0
  %v660 = vadd.f32 %v434, %v659
  %v661 = vpop.f32.mrb[0].mxu0
  %662 = vmatprep.mubr.f32.mxu0 0.0
  %663 = vmatmul.mubr.f32.gmra.mrb[0].mxu0 %v477
  %v664 = vpop.f32.mrb[0].mxu0
  %v665 = vadd.f32 %v434, %v664
  %v666 = vpop.f32.mrb[0].mxu0
  %667 = vmatprep.mubr.f32.mxu0 0.0
  %668 = vmatmul.mubr.f32.gmra.mrb[0].mxu0 %v480
  %v669 = vpop.f32.mrb[0].mxu0
  %v670 = vadd.f32 %v434, %v669
  %v671 = vpop.f32.mrb[0].mxu0
  %672 = vmatprep.mubr.f32.mxu0 0.0
  %673 = vmatmul.mubr.f32.gmra.mrb[0].mxu0 %v483
  %v674 = vpop.f32.mrb[0].mxu0
  %v675 = vadd.f32 %v434, %v674
  %v676 = vpop.f32.mrb[0].mxu0
  %677 = vmatprep.mubr.f32.mxu0 0.0
  %678 = vmatmul.mubr.f32.gmra.mrb[0].mxu0 %v486
  %v679 = vpop.f32.mrb[0].mxu0
  %v680 = vadd.f32 %v434, %v679
  %v681 = vpop.f32.mrb[0].mxu0
  %682 = vmatprep.mubr.f32.mxu0 0.0
  %683 = vmatmul.mubr.f32.gmra.mrb[0].mxu0 %v489
  %v684 = vpop.f32.mrb[0].mxu0
  %v685 = vadd.f32 %v434, %v684
  %v686 = vpop.f32.mrb[0].mxu0
  %687 = vmatprep.mubr.f32.mxu0 0.0
  %688 = vmatmul.mubr.f32.gmra.mrb[0].mxu0 %v492
  %v689 = vpop.f32.mrb[0].mxu0
  %v690 = vadd.f32 %v434, %v689
  %v691 = vpop.f32.mrb[0].mxu0
  %692 = vmatprep.mubr.f32.mxu0 0.0
  %693 = vmatmul.mubr.f32.gmra.mrb[0].mxu0 %v495
  %v694 = vpop.f32.mrb[0].mxu0
  %v695 = vadd.f32 %v434, %v694
  %v696 = vpop.f32.mrb[0].mxu0
  %697 = vmatprep.mubr.f32.mxu0 0.0
  %698 = vmatmul.mubr.f32.gmra.mrb[0].mxu0 %v498
  %v699 = vpop.f32.mrb[0].mxu0
  %v700 = vadd.f32 %v434, %v699
  %v701 = vpop.f32.mrb[0].mxu0
  %702 = vmatprep.mubr.f32.mxu0 0.0
  %703 = vmatmul.mubr.f32.gmra.mrb[0].mxu0 %v501
  %v704 = vpop.f32.mrb[0].mxu0
  %v705 = vadd.f32 %v434, %v704
  %v706 = vpop.f32.mrb[0].mxu0
  %707 = vmatprep.mubr.f32.mxu0 0.0
  %708 = vmatmul.mubr.f32.gmra.mrb[0].mxu0 %v504
  %v709 = vpop.f32.mrb[0].mxu0
  %v710 = vadd.f32 %v434, %v709
  %v711 = vpop.f32.mrb[0].mxu0
  %712 = vmatprep.mubr.f32.mxu0 0.0
  %713 = vmatmul.mubr.f32.gmra.mrb[0].mxu0 %v507
  %v714 = vpop.f32.mrb[0].mxu0
  %v715 = vadd.f32 %v434, %v714
  %v716 = vpop.f32.mrb[0].mxu0
  %717 = vmatprep.mubr.f32.mxu0 0.0
  %718 = vmatmul.mubr.f32.gmra.mrb[0].mxu0 %v510
  %v719 = vpop.f32.mrb[0].mxu0
  %v720 = vadd.f32 %v434, %v719
  %v721 = vpop.f32.mrb[0].mxu0
  %722 = vmatprep.mubr.f32.mxu0 0.0
  %723 = vmatmul.mubr.f32.gmra.mrb[0].mxu0 %v513
  %v724 = vpop.f32.mrb[0].mxu0
  %v725 = vadd.f32 %v434, %v724
  %v726 = vpop.f32.mrb[0].mxu0
  %727 = vmatprep.mubr.f32.mxu0 0.0
  %728 = vmatmul.mubr.f32.gmra.mrb[0].mxu0 %v516
  %v729 = vpop.f32.mrb[0].mxu0
  %v730 = vadd.f32 %v434, %v729
  %v731 = vpop.f32.mrb[0].mxu0
  %732 = vmatprep.mubr.f32.mxu0 0.0
  %733 = vmatmul.mubr.f32.gmra.mrb[0].mxu0 %v519
  %v734 = vpop.f32.mrb[0].mxu0
  %v735 = vadd.f32 %v434, %v734
  %v736 = vpop.f32.mrb[0].mxu0
  %737 = vmatprep.mubr.f32.mxu0 0.0
  %738 = vmatmul.mubr.f32.gmra.mrb[0].mxu0 %v522
  %v739 = vpop.f32.mrb[0].mxu0
  %v740 = vadd.f32 %v434, %v739
  %v741 = vpop.f32.mrb[0].mxu0
  %742 = vmatprep.mubr.f32.mxu0 0.0
  %743 = vmatmul.mubr.f32.gmra.mrb[0].mxu0 %v525
  %v744 = vpop.f32.mrb[0].mxu0
  %v745 = vadd.f32 %v434, %v744
  %v746 = vpop.f32.mrb[0].mxu0
  %747 = vmatprep.mubr.f32.mxu0 0.0
  %748 = vmatmul.mubr.f32.gmra.mrb[0].mxu0 %v528
  %v749 = vpop.f32.mrb[0].mxu0
  %v750 = vadd.f32 %v434, %v749
  %v751 = vpop.f32.mrb[0].mxu0
  %752 = vmatprep.mubr.f32.mxu0 0.0
  %753 = vmatmul.mubr.f32.gmra.mrb[0].mxu0 %v531
  %v754 = vpop.f32.mrb[0].mxu0
  %v755 = vadd.f32 %v434, %v754
  %v756 = vpop.f32.mrb[0].mxu0
  %757 = vdwg.mxu0
  %v758 = vmax.f32 %v600, 0.0
  %v759 = vmax.f32 %v605, 0.0
  %v760 = vmax.f32 %v610, 0.0
  %v761 = vmax.f32 %v615, 0.0
  %v762 = vmax.f32 %v620, 0.0
  %v763 = vmax.f32 %v625, 0.0
  %v764 = vmax.f32 %v630, 0.0
  %v765 = vmax.f32 %v635, 0.0
  %v766 = vmax.f32 %v640, 0.0
  %v767 = vmax.f32 %v645, 0.0
  %v768 = vmax.f32 %v650, 0.0
  %v769 = vmax.f32 %v655, 0.0
  %v770 = vmax.f32 %v660, 0.0
  %v771 = vmax.f32 %v665, 0.0
  %v772 = vmax.f32 %v670, 0.0
  %v773 = vmax.f32 %v675, 0.0
  %v774 = vmax.f32 %v680, 0.0
  %v775 = vmax.f32 %v685, 0.0
  %v776 = vmax.f32 %v690, 0.0
  %v777 = vmax.f32 %v695, 0.0
  %v778 = vmax.f32 %v700, 0.0
  %v779 = vmax.f32 %v705, 0.0
  %v780 = vmax.f32 %v710, 0.0
  %v781 = vmax.f32 %v715, 0.0
  %v782 = vmax.f32 %v720, 0.0
  %v783 = vmax.f32 %v725, 0.0
  %v784 = vmax.f32 %v730, 0.0
  %v785 = vmax.f32 %v735, 0.0
  %v786 = vmax.f32 %v740, 0.0
  %v787 = vmax.f32 %v745, 0.0
  %v788 = vmax.f32 %v750, 0.0
  %v789 = vmax.f32 %v755, 0.0
  %v790 = vld [vmem:[%s5] sm:$0xff]
  %v791 = vld [vmem:[%s6] sm:$0x1]
  %v793 = vlaneseq
  %v794 = vshrl.u32 %v793, 7
  %v795 = vsub.s32 0, %v794
  %v796 = vrot.slane %v791, %v795
  %vm798 = vcmask 64512
  %v800 = vsel %vm798, %v758, 0
  %v803 = vsel %vm798, %v759, 0
  %v806 = vsel %vm798, %v760, 0
  %v809 = vsel %vm798, %v761, 0
  %v812 = vsel %vm798, %v762, 0
  %v815 = vsel %vm798, %v763, 0
  %v818 = vsel %vm798, %v764, 0
  %v821 = vsel %vm798, %v765, 0
  %v824 = vsel %vm798, %v766, 0
  %v827 = vsel %vm798, %v767, 0
  %v830 = vsel %vm798, %v768, 0
  %v833 = vsel %vm798, %v769, 0
  %v836 = vsel %vm798, %v770, 0
  %v839 = vsel %vm798, %v771, 0
  %v842 = vsel %vm798, %v772, 0
  %v845 = vsel %vm798, %v773, 0
  %v848 = vsel %vm798, %v774, 0
  %v851 = vsel %vm798, %v775, 0
  %v854 = vsel %vm798, %v776, 0
  %v857 = vsel %vm798, %v777, 0
  %v860 = vsel %vm798, %v778, 0
  %v863 = vsel %vm798, %v779, 0
  %v866 = vsel %vm798, %v780, 0
  %v869 = vsel %vm798, %v781, 0
  %v872 = vsel %vm798, %v782, 0
  %v875 = vsel %vm798, %v783, 0
  %v878 = vsel %vm798, %v784, 0
  %v881 = vsel %vm798, %v785, 0
  %v884 = vsel %vm798, %v786, 0
  %v887 = vsel %vm798, %v787, 0
  %v890 = vsel %vm798, %v788, 0
  %v893 = vsel %vm798, %v789, 0
  %895 = vmatprep.subr.mxu0 0.0
  %896 = vmatpush1.msra.mxu0 %v790
  %897 = vmatprep.subr.mxu0 0.0
  %898 = vmatpush1.msra.mxu0 0.0
  %899 = vmatprep.subr.mxu0 0.0
  %900 = vmatpush1.msra.mxu0 0.0
  %901 = vmatprep.subr.mxu0 0.0
  %902 = vmatpush1.msra.mxu0 0.0
  %903 = vmatprep.subr.mxu0 0.0
  %904 = vmatpush1.msra.mxu0 0.0
  %905 = vmatprep.subr.mxu0 0.0
  %906 = vmatpush1.msra.mxu0 0.0
  %907 = vmatprep.subr.mxu0 0.0
  %908 = vmatpush1.msra.mxu0 0.0
  %909 = vmatprep.subr.mxu0 0.0
  %910 = vmatpush1.msra.mxu0 0.0
  %911 = vmatprep.subr.mxu0 0.0
  %912 = vmatpush1.msra.mxu0 0.0
  %913 = vmatprep.subr.mxu0 0.0
  %914 = vmatpush1.msra.mxu0 0.0
  %915 = vmatprep.subr.mxu0 0.0
  %916 = vmatpush1.msra.mxu0 0.0
  %917 = vmatprep.subr.mxu0 0.0
  %918 = vmatpush1.msra.mxu0 0.0
  %919 = vmatprep.subr.mxu0 0.0
  %920 = vmatpush1.msra.mxu0 0.0
  %921 = vmatprep.subr.mxu0 0.0
  %922 = vmatpush1.msra.mxu0 0.0
  %923 = vmatprep.subr.mxu0 0.0
  %924 = vmatpush1.msra.mxu0 0.0
  %925 = vmatprep.subr.mxu0 0.0
  %926 = vmatpush1.msra.mxu0 0.0
  %927 = vmatprep.subr.mxu0 0.0
  %928 = vmatpush1.msra.mxu0 0.0
  %929 = vmatprep.subr.mxu0 0.0
  %930 = vmatpush1.msra.mxu0 0.0
  %931 = vmatprep.subr.mxu0 0.0
  %932 = vmatpush1.msra.mxu0 0.0
  %933 = vmatprep.subr.mxu0 0.0
  %934 = vmatpush1.msra.mxu0 0.0
  %935 = vmatprep.subr.mxu0 0.0
  %936 = vmatpush1.msra.mxu0 0.0
  %937 = vmatprep.subr.mxu0 0.0
  %938 = vmatpush1.msra.mxu0 0.0
  %939 = vmatprep.subr.mxu0 0.0
  %940 = vmatpush1.msra.mxu0 0.0
  %941 = vmatprep.subr.mxu0 0.0
  %942 = vmatpush1.msra.mxu0 0.0
  %943 = vmatprep.subr.mxu0 0.0
  %944 = vmatpush1.msra.mxu0 0.0
  %945 = vmatprep.subr.mxu0 0.0
  %946 = vmatpush1.msra.mxu0 0.0
  %947 = vmatprep.subr.mxu0 0.0
  %948 = vmatpush1.msra.mxu0 0.0
  %949 = vmatprep.subr.mxu0 0.0
  %950 = vmatpush1.msra.mxu0 0.0
  %951 = vmatprep.subr.mxu0 0.0
  %952 = vmatpush1.msra.mxu0 0.0
  %953 = vmatprep.subr.mxu0 0.0
  %954 = vmatpush1.msra.mxu0 0.0
  %955 = vmatprep.subr.mxu0 0.0
  %956 = vmatpush1.msra.mxu0 0.0
  %957 = vmatprep.subr.mxu0 0.0
  %958 = vmatpush1.msra.mxu0 0.0
  %959 = vmatprep.mubr.f32.mxu0 0.0
  %960 = vmatmul.mubr.f32.gmra.mrb[0].mxu0 %v800
  %v961 = vpop.f32.mrb[0].mxu0
  %v962 = vadd.f32 %v796, %v961
  %v963 = vpop.f32.mrb[0].mxu0
  %964 = vmatprep.mubr.f32.mxu0 0.0
  %965 = vmatmul.mubr.f32.gmra.mrb[0].mxu0 %v803
  %v966 = vpop.f32.mrb[0].mxu0
  %v967 = vadd.f32 %v796, %v966
  %v968 = vpop.f32.mrb[0].mxu0
  %969 = vmatprep.mubr.f32.mxu0 0.0
  %970 = vmatmul.mubr.f32.gmra.mrb[0].mxu0 %v806
  %v971 = vpop.f32.mrb[0].mxu0
  %v972 = vadd.f32 %v796, %v971
  %v973 = vpop.f32.mrb[0].mxu0
  %974 = vmatprep.mubr.f32.mxu0 0.0
  %975 = vmatmul.mubr.f32.gmra.mrb[0].mxu0 %v809
  %v976 = vpop.f32.mrb[0].mxu0
  %v977 = vadd.f32 %v796, %v976
  %v978 = vpop.f32.mrb[0].mxu0
  %979 = vmatprep.mubr.f32.mxu0 0.0
  %980 = vmatmul.mubr.f32.gmra.mrb[0].mxu0 %v812
  %v981 = vpop.f32.mrb[0].mxu0
  %v982 = vadd.f32 %v796, %v981
  %v983 = vpop.f32.mrb[0].mxu0
  %984 = vmatprep.mubr.f32.mxu0 0.0
  %985 = vmatmul.mubr.f32.gmra.mrb[0].mxu0 %v815
  %v986 = vpop.f32.mrb[0].mxu0
  %v987 = vadd.f32 %v796, %v986
  %v988 = vpop.f32.mrb[0].mxu0
  %989 = vmatprep.mubr.f32.mxu0 0.0
  %990 = vmatmul.mubr.f32.gmra.mrb[0].mxu0 %v818
  %v991 = vpop.f32.mrb[0].mxu0
  %v992 = vadd.f32 %v796, %v991
  %v993 = vpop.f32.mrb[0].mxu0
  %994 = vmatprep.mubr.f32.mxu0 0.0
  %995 = vmatmul.mubr.f32.gmra.mrb[0].mxu0 %v821
  %v996 = vpop.f32.mrb[0].mxu0
  %v997 = vadd.f32 %v796, %v996
  %v998 = vpop.f32.mrb[0].mxu0
  %999 = vmatprep.mubr.f32.mxu0 0.0
  %1000 = vmatmul.mubr.f32.gmra.mrb[0].mxu0 %v824
  %v1001 = vpop.f32.mrb[0].mxu0
  %v1002 = vadd.f32 %v796, %v1001
  %v1003 = vpop.f32.mrb[0].mxu0
  %1004 = vmatprep.mubr.f32.mxu0 0.0
  %1005 = vmatmul.mubr.f32.gmra.mrb[0].mxu0 %v827
  %v1006 = vpop.f32.mrb[0].mxu0
  %v1007 = vadd.f32 %v796, %v1006
  %v1008 = vpop.f32.mrb[0].mxu0
  %1009 = vmatprep.mubr.f32.mxu0 0.0
  %1010 = vmatmul.mubr.f32.gmra.mrb[0].mxu0 %v830
  %v1011 = vpop.f32.mrb[0].mxu0
  %v1012 = vadd.f32 %v796, %v1011
  %v1013 = vpop.f32.mrb[0].mxu0
  %1014 = vmatprep.mubr.f32.mxu0 0.0
  %1015 = vmatmul.mubr.f32.gmra.mrb[0].mxu0 %v833
  %v1016 = vpop.f32.mrb[0].mxu0
  %v1017 = vadd.f32 %v796, %v1016
  %v1018 = vpop.f32.mrb[0].mxu0
  %1019 = vmatprep.mubr.f32.mxu0 0.0
  %1020 = vmatmul.mubr.f32.gmra.mrb[0].mxu0 %v836
  %v1021 = vpop.f32.mrb[0].mxu0
  %v1022 = vadd.f32 %v796, %v1021
  %v1023 = vpop.f32.mrb[0].mxu0
  %1024 = vmatprep.mubr.f32.mxu0 0.0
  %1025 = vmatmul.mubr.f32.gmra.mrb[0].mxu0 %v839
  %v1026 = vpop.f32.mrb[0].mxu0
  %v1027 = vadd.f32 %v796, %v1026
  %v1028 = vpop.f32.mrb[0].mxu0
  %1029 = vmatprep.mubr.f32.mxu0 0.0
  %1030 = vmatmul.mubr.f32.gmra.mrb[0].mxu0 %v842
  %v1031 = vpop.f32.mrb[0].mxu0
  %v1032 = vadd.f32 %v796, %v1031
  %v1033 = vpop.f32.mrb[0].mxu0
  %1034 = vmatprep.mubr.f32.mxu0 0.0
  %1035 = vmatmul.mubr.f32.gmra.mrb[0].mxu0 %v845
  %v1036 = vpop.f32.mrb[0].mxu0
  %v1037 = vadd.f32 %v796, %v1036
  %v1038 = vpop.f32.mrb[0].mxu0
  %1039 = vmatprep.mubr.f32.mxu0 0.0
  %1040 = vmatmul.mubr.f32.gmra.mrb[0].mxu0 %v848
  %v1041 = vpop.f32.mrb[0].mxu0
  %v1042 = vadd.f32 %v796, %v1041
  %v1043 = vpop.f32.mrb[0].mxu0
  %1044 = vmatprep.mubr.f32.mxu0 0.0
  %1045 = vmatmul.mubr.f32.gmra.mrb[0].mxu0 %v851
  %v1046 = vpop.f32.mrb[0].mxu0
  %v1047 = vadd.f32 %v796, %v1046
  %v1048 = vpop.f32.mrb[0].mxu0
  %1049 = vmatprep.mubr.f32.mxu0 0.0
  %1050 = vmatmul.mubr.f32.gmra.mrb[0].mxu0 %v854
  %v1051 = vpop.f32.mrb[0].mxu0
  %v1052 = vadd.f32 %v796, %v1051
  %v1053 = vpop.f32.mrb[0].mxu0
  %1054 = vmatprep.mubr.f32.mxu0 0.0
  %1055 = vmatmul.mubr.f32.gmra.mrb[0].mxu0 %v857
  %v1056 = vpop.f32.mrb[0].mxu0
  %v1057 = vadd.f32 %v796, %v1056
  %v1058 = vpop.f32.mrb[0].mxu0
  %1059 = vmatprep.mubr.f32.mxu0 0.0
  %1060 = vmatmul.mubr.f32.gmra.mrb[0].mxu0 %v860
  %v1061 = vpop.f32.mrb[0].mxu0
  %v1062 = vadd.f32 %v796, %v1061
  %v1063 = vpop.f32.mrb[0].mxu0
  %1064 = vmatprep.mubr.f32.mxu0 0.0
  %1065 = vmatmul.mubr.f32.gmra.mrb[0].mxu0 %v863
  %v1066 = vpop.f32.mrb[0].mxu0
  %v1067 = vadd.f32 %v796, %v1066
  %v1068 = vpop.f32.mrb[0].mxu0
  %1069 = vmatprep.mubr.f32.mxu0 0.0
  %1070 = vmatmul.mubr.f32.gmra.mrb[0].mxu0 %v866
  %v1071 = vpop.f32.mrb[0].mxu0
  %v1072 = vadd.f32 %v796, %v1071
  %v1073 = vpop.f32.mrb[0].mxu0
  %1074 = vmatprep.mubr.f32.mxu0 0.0
  %1075 = vmatmul.mubr.f32.gmra.mrb[0].mxu0 %v869
  %v1076 = vpop.f32.mrb[0].mxu0
  %v1077 = vadd.f32 %v796, %v1076
  %v1078 = vpop.f32.mrb[0].mxu0
  %1079 = vmatprep.mubr.f32.mxu0 0.0
  %1080 = vmatmul.mubr.f32.gmra.mrb[0].mxu0 %v872
  %v1081 = vpop.f32.mrb[0].mxu0
  %v1082 = vadd.f32 %v796, %v1081
  %v1083 = vpop.f32.mrb[0].mxu0
  %1084 = vmatprep.mubr.f32.mxu0 0.0
  %1085 = vmatmul.mubr.f32.gmra.mrb[0].mxu0 %v875
  %v1086 = vpop.f32.mrb[0].mxu0
  %v1087 = vadd.f32 %v796, %v1086
  %v1088 = vpop.f32.mrb[0].mxu0
  %1089 = vmatprep.mubr.f32.mxu0 0.0
  %1090 = vmatmul.mubr.f32.gmra.mrb[0].mxu0 %v878
  %v1091 = vpop.f32.mrb[0].mxu0
  %v1092 = vadd.f32 %v796, %v1091
  %v1093 = vpop.f32.mrb[0].mxu0
  %1094 = vmatprep.mubr.f32.mxu0 0.0
  %1095 = vmatmul.mubr.f32.gmra.mrb[0].mxu0 %v881
  %v1096 = vpop.f32.mrb[0].mxu0
  %v1097 = vadd.f32 %v796, %v1096
  %v1098 = vpop.f32.mrb[0].mxu0
  %1099 = vmatprep.mubr.f32.mxu0 0.0
  %1100 = vmatmul.mubr.f32.gmra.mrb[0].mxu0 %v884
  %v1101 = vpop.f32.mrb[0].mxu0
  %v1102 = vadd.f32 %v796, %v1101
  %v1103 = vpop.f32.mrb[0].mxu0
  %1104 = vmatprep.mubr.f32.mxu0 0.0
  %1105 = vmatmul.mubr.f32.gmra.mrb[0].mxu0 %v887
  %v1106 = vpop.f32.mrb[0].mxu0
  %v1107 = vadd.f32 %v796, %v1106
  %v1108 = vpop.f32.mrb[0].mxu0
  %1109 = vmatprep.mubr.f32.mxu0 0.0
  %1110 = vmatmul.mubr.f32.gmra.mrb[0].mxu0 %v890
  %v1111 = vpop.f32.mrb[0].mxu0
  %v1112 = vadd.f32 %v796, %v1111
  %v1113 = vpop.f32.mrb[0].mxu0
  %1114 = vmatprep.mubr.f32.mxu0 0.0
  %1115 = vmatmul.mubr.f32.gmra.mrb[0].mxu0 %v893
  %v1116 = vpop.f32.mrb[0].mxu0
  %v1117 = vadd.f32 %v796, %v1116
  %v1118 = vpop.f32.mrb[0].mxu0
  %1119 = vdwg.mxu0
  %vm1120 = vcmask 15360
  %1121 = vst.msk [vmem:[%s7] sm:$0xff] %vm1120, %v962
  %1122 = vst.msk [vmem:[%s7 + $0x8] sm:$0xff] %vm1120, %v967
  %1123 = vst.msk [vmem:[%s7 + $0x10] sm:$0xff] %vm1120, %v972
  %1124 = vst.msk [vmem:[%s7 + $0x18] sm:$0xff] %vm1120, %v977
  %1125 = vst.msk [vmem:[%s7 + $0x20] sm:$0xff] %vm1120, %v982
  %1126 = vst.msk [vmem:[%s7 + $0x28] sm:$0xff] %vm1120, %v987
  %1127 = vst.msk [vmem:[%s7 + $0x30] sm:$0xff] %vm1120, %v992
  %1128 = vst.msk [vmem:[%s7 + $0x38] sm:$0xff] %vm1120, %v997
  %1129 = vst.msk [vmem:[%s7 + $0x40] sm:$0xff] %vm1120, %v1002
  %1130 = vst.msk [vmem:[%s7 + $0x48] sm:$0xff] %vm1120, %v1007
  %1131 = vst.msk [vmem:[%s7 + $0x50] sm:$0xff] %vm1120, %v1012
  %1132 = vst.msk [vmem:[%s7 + $0x58] sm:$0xff] %vm1120, %v1017
  %1133 = vst.msk [vmem:[%s7 + $0x60] sm:$0xff] %vm1120, %v1022
  %1134 = vst.msk [vmem:[%s7 + $0x68] sm:$0xff] %vm1120, %v1027
  %1135 = vst.msk [vmem:[%s7 + $0x70] sm:$0xff] %vm1120, %v1032
  %1136 = vst.msk [vmem:[%s7 + $0x78] sm:$0xff] %vm1120, %v1037
  %1137 = vst.msk [vmem:[%s7 + $0x80] sm:$0xff] %vm1120, %v1042
  %1138 = vst.msk [vmem:[%s7 + $0x88] sm:$0xff] %vm1120, %v1047
  %1139 = vst.msk [vmem:[%s7 + $0x90] sm:$0xff] %vm1120, %v1052
  %1140 = vst.msk [vmem:[%s7 + $0x98] sm:$0xff] %vm1120, %v1057
  %1141 = vst.msk [vmem:[%s7 + $0xa0] sm:$0xff] %vm1120, %v1062
  %1142 = vst.msk [vmem:[%s7 + $0xa8] sm:$0xff] %vm1120, %v1067
  %1143 = vst.msk [vmem:[%s7 + $0xb0] sm:$0xff] %vm1120, %v1072
  %1144 = vst.msk [vmem:[%s7 + $0xb8] sm:$0xff] %vm1120, %v1077
  %1145 = vst.msk [vmem:[%s7 + $0xc0] sm:$0xff] %vm1120, %v1082
  %1146 = vst.msk [vmem:[%s7 + $0xc8] sm:$0xff] %vm1120, %v1087
  %1147 = vst.msk [vmem:[%s7 + $0xd0] sm:$0xff] %vm1120, %v1092
  %1148 = vst.msk [vmem:[%s7 + $0xd8] sm:$0xff] %vm1120, %v1097
  %1149 = vst.msk [vmem:[%s7 + $0xe0] sm:$0xff] %vm1120, %v1102
  %1150 = vst.msk [vmem:[%s7 + $0xe8] sm:$0xff] %vm1120, %v1107
  %1151 = vst.msk [vmem:[%s7 + $0xf0] sm:$0xff] %vm1120, %v1112
  %1152 = vst.msk [vmem:[%s7 + $0xf8] sm:$0xff] %vm1120, %v1117
  // Predicated region
  $region30: #{tpu_custom_call.1} parent=0 // pred_check
    _
  $region31: #{tpu_custom_call.1} parent=0 // pred_check_branch
    %1154 = sbr.rel (0) target = $region33
  $region32: #{tpu_custom_call.1} parent=0 // pred_region
    _
  $region33: #{tpu_custom_call.1} parent=0 // pred_fallthru
    _
  // Predicated region
  $region34: #{tpu_custom_call.1} parent=0 // pred_check
    _
  $region35: #{tpu_custom_call.1} parent=0 // pred_check_branch
    %1156 = sbr.rel (0) target = $region37
  $region36: #{tpu_custom_call.1} parent=0 // pred_region
    _
  $region37: #{tpu_custom_call.1} parent=0 // pred_fallthru
    _

</llo_original>
